<compile_context>
chip_gen: v7x
topology: tpu7x:2x2x1
jax: 0.10.0
libtpu: 0.0.40
codegen_flags: <defaults>
</compile_context>

<pallas_src>
import functools
import math

import jax
import jax.numpy as jnp
from jax.experimental import pallas as pl
from jax.experimental.pallas import tpu as pltpu

IN_FEATURES = 768
OUT_FEATURES = 1024


def _linear_kernel(x_ref, w_ref, b_ref, o_ref):
    """o = x @ w + b for one (M, N) tile; full K in a single MXU matmul."""
    x = x_ref[...].astype(w_ref.dtype)  # no-op when x is already bf16
    acc = jnp.dot(x, w_ref[...], preferred_element_type=jnp.float32)
    o_ref[...] = (acc + b_ref[...]).astype(o_ref.dtype)


def _cdiv(a, b):
    return -(-a // b)


def _round_up(x, m):
    return _cdiv(x, m) * m


@functools.partial(jax.jit, static_argnames=("tm",))
def projection_forward(x, w_t, b, *, tm=1024):
    """x: [..., 768], w_t: [768, 1024] (pre-transposed, bf16), b: [1024] f32."""
    orig_shape = x.shape
    K = orig_shape[-1]
    N = w_t.shape[-1]
    assert K == IN_FEATURES and N == OUT_FEATURES

    M = math.prod(orig_shape[:-1]) if orig_shape[:-1] else 1
    x2 = x.reshape(M, K)
    b2 = b.reshape(1, N).astype(jnp.float32)

    # --- M tiling: multiples of 16 (bf16 sublane packing), ragged M balanced
    # across blocks instead of padding the last block up to a full `tm`.
    tm = max(16, _round_up(tm, 16))
    num_m_blocks = max(1, _cdiv(M, tm))
    tile_m = min(_round_up(_cdiv(M, num_m_blocks), 16), _round_up(M, 16))
    m_blocks = _cdiv(M, tile_m)
    m_pad = m_blocks * tile_m
    if m_pad != M:
        x2 = jnp.pad(x2, ((0, m_pad - M), (0, 0)))

    # --- N tiling: a single M block would leave v7x's second TensorCore idle,
    # so split N into two lane-dense 512-wide blocks in that case; otherwise
    # keep the full 1024 lanes per store.
    n_blocks = 2 if m_blocks == 1 else 1
    tile_n = N // n_blocks

    grid = (m_blocks, n_blocks)

    cost = pl.CostEstimate(
        flops=2 * M * K * N,
        transcendentals=0,
        bytes_accessed=(
            x2.size * x2.dtype.itemsize          # activations in
            + w_t.size * w_t.dtype.itemsize      # resident weight
            + b2.size * 4                        # bias
            + m_pad * N * x.dtype.itemsize       # activations out
        ),
    )

    out = pl.pallas_call(
        _linear_kernel,
        out_shape=jax.ShapeDtypeStruct((m_pad, N), x.dtype),
        grid_spec=pltpu.PrefetchScalarGridSpec(
            num_scalar_prefetch=0,
            grid=grid,
            in_specs=[
                pl.BlockSpec((tile_m, K), lambda i, j: (i, 0)),   # x tile, full K
                pl.BlockSpec((K, tile_n), lambda i, j: (0, j)),   # weight (resident)
                pl.BlockSpec((1, tile_n), lambda i, j: (0, j)),   # bias (f32)
            ],
            out_specs=pl.BlockSpec((tile_m, tile_n), lambda i, j: (i, j)),
        ),
        compiler_params=pltpu.CompilerParams(
            dimension_semantics=("parallel", "parallel"),
            vmem_limit_bytes=48 * 1024 * 1024,
        ),
        cost_estimate=cost,
    )(x2, w_t, b2)

    if m_pad != M:
        out = out[:M]
    return out.reshape(*orig_shape[:-1], N)


def init_params(key):
    """Deterministic init matching nn.Linear(768, 1024) parameter shapes.

    PyTorch stores weight as [out, in]; we keep a transposed [in, out] copy in
    bf16 (MXU storage/compute dtype).  Bias stays f32.
    """
    k_w, k_b = jax.random.split(key)
    bound = 1.0 / (IN_FEATURES ** 0.5)
    w = jax.random.uniform(
        k_w, (OUT_FEATURES, IN_FEATURES), jnp.float32, -bound, bound
    )
    b = jax.random.uniform(k_b, (OUT_FEATURES,), jnp.float32, -bound, bound)
    return w.T.astype(jnp.bfloat16), b


if __name__ == "__main__":
    key = jax.random.PRNGKey(0)
    k_params, k_x = jax.random.split(key)

    w_t, b = init_params(k_params)

    # Small input consistent with the module: [batch=2, seq=8, 768].
    # bf16 activations: halves x/out HBM traffic; MXU still accumulates f32.
    x = jax.random.normal(k_x, (2, 8, IN_FEATURES), jnp.float32).astype(jnp.bfloat16)

    out = projection_forward(x, w_t, b)
    out = jax.block_until_ready(out)

    # Reference: same bf16-rounded operands, f32 accumulate + f32 bias add.
    x2 = x.reshape(-1, IN_FEATURES).astype(jnp.float32)
    ref = (
        jnp.dot(x2, w_t.astype(jnp.float32), precision=jax.lax.Precision.HIGHEST)
        + b
    ).reshape(2, 8, OUT_FEATURES)

    assert out.shape == (2, 8, OUT_FEATURES), out.shape
    assert out.dtype == x.dtype, out.dtype
    max_err = float(jnp.max(jnp.abs(out.astype(jnp.float32) - ref)))
    assert jnp.allclose(out.astype(jnp.float32), ref, atol=3e-2, rtol=3e-2), max_err

    print("KERNEL_OK")
</pallas_src>

<mosaic_0001>
module attributes {stable_mosaic.version = 11 : i64} {
  func.func @_linear_kernel(%arg0: i32, %arg1: i32, %arg2: memref<16x768xbf16, #tpu.memory_space<vmem>>, %arg3: memref<768x512xbf16, #tpu.memory_space<vmem>>, %arg4: memref<1x512xf32, #tpu.memory_space<vmem>>, %arg5: memref<16x512xbf16, #tpu.memory_space<vmem>>) attributes {dimension_semantics = [#tpu.dimension_semantics<parallel>, #tpu.dimension_semantics<parallel>], iteration_bounds = array<i64: 1, 2>, scalar_prefetch = 0 : i64, scratch_operands = 0 : i64, tpu.core_type = #tpu.core_type<tc>, window_params = [{transform_indices = @transform_0, window_bounds = array<i64: 16, 768>}, {transform_indices = @transform_1, window_bounds = array<i64: 768, 512>}, {transform_indices = @transform_2, window_bounds = array<i64: 1, 512>}, {transform_indices = @transform_3, window_bounds = array<i64: 16, 512>}]} {
    %c0 = arith.constant 0 : index
    %c0_0 = arith.constant 0 : index
    %0 = vector.load %arg2[%c0, %c0_0] : memref<16x768xbf16, #tpu.memory_space<vmem>>, vector<16x768xbf16>
    %c0_1 = arith.constant 0 : index
    %c0_2 = arith.constant 0 : index
    %1 = vector.load %arg3[%c0_1, %c0_2] : memref<768x512xbf16, #tpu.memory_space<vmem>>, vector<768x512xbf16>
    %cst = arith.constant dense<0.000000e+00> : vector<16x512xf32>
    %2 = tpu.matmul %0, %1, %cst {dimension_numbers = #tpu.dot_dimension_numbers<[1], [0], [0], [1], [0, 0, 1, 1], [], []>} : vector<16x768xbf16>, vector<768x512xbf16>, vector<16x512xf32> -> vector<16x512xf32>
    %c0_3 = arith.constant 0 : index
    %c0_4 = arith.constant 0 : index
    %3 = vector.load %arg4[%c0_3, %c0_4] : memref<1x512xf32, #tpu.memory_space<vmem>>, vector<1x512xf32>
    %4 = vector.broadcast %3 : vector<1x512xf32> to vector<16x512xf32>
    %5 = arith.addf %2, %4 : vector<16x512xf32>
    %6 = arith.truncf %5 : vector<16x512xf32> to vector<16x512xbf16>
    %c0_5 = arith.constant 0 : index
    %c0_6 = arith.constant 0 : index
    %7 = vector.load %arg5[%c0_5, %c0_6] : memref<16x512xbf16, #tpu.memory_space<vmem>>, vector<16x512xbf16>
    tpu.vector_store %arg5[%c0_5, %c0_6], %6 {strides = array<i32>} : memref<16x512xbf16, #tpu.memory_space<vmem>>, vector<16x512xbf16>,
    return
  }
  func.func @transform_0(%arg0: i32, %arg1: i32) -> (i32, i32) {
    %c0_i32 = arith.constant 0 : i32
    %c0_i32_0 = arith.constant 0 : i32
    return %arg0, %c0_i32 : i32, i32
  }
  func.func @transform_1(%arg0: i32, %arg1: i32) -> (i32, i32) {
    %c0_i32 = arith.constant 0 : i32
    %c0_i32_0 = arith.constant 0 : i32
    return %c0_i32, %arg1 : i32, i32
  }
  func.func @transform_2(%arg0: i32, %arg1: i32) -> (i32, i32) {
    %c0_i32 = arith.constant 0 : i32
    %c0_i32_0 = arith.constant 0 : i32
    return %c0_i32, %arg1 : i32, i32
  }
  func.func @transform_3(%arg0: i32, %arg1: i32) -> (i32, i32) {
    %c0_i32 = arith.constant 0 : i32
    return %arg0, %arg1 : i32, i32
  }
}

</mosaic_0001>

<llo_original>
// kernel: projection_forward.1
$region0: #{projection_forward.1}
  #allocation0 [shape = 'u32[]', space=smem, size = 0x4, offset = 0x4, fixed_abs, tag = 'smem constant byte address 0x4 - core index']
  #allocation1 [shape = 'u32[144,128]{1,0:T(1,128)}', space=vmem, size = 0x12000, scoped, tag = 'internal scratch']
  %s0 = inlined_call_operand.hbm [shape: bf16[16,768], index: 0, kind: input, shape index: {}]
  %s1 = inlined_call_operand.hbm [shape: bf16[768,1024], index: 1, kind: input, shape index: {}]
  %s2 = inlined_call_operand.hbm [shape: f32[1,1024], index: 2, kind: input, shape index: {}]
  %s3 = inlined_call_operand.hbm [shape: bf16[16,1024], index: 3, kind: output, shape index: {}]
  %s4 = sld [smem:[#allocation0]]
  $region57: #{projection_forward.1} parent=0
    _
  %s6 = ssub.s32 1, %s4
  %s7 = scalar_select 0, %s6, %s4
  $region1: #{projection_forward.1} parent=0
    #allocation2 [shape = 'u8[24576]{0}', space=vmem, size = 0x6000, scoped, tag = 'input window, operand 0, single buffered']
    #allocation3 [shape = 's32[2]{0}', space=sflag, size = 0x8, scoped, tag = 'scoped memory for projection_forward.1']
    #allocation4 [shape = 's32[2]{0}', space=sflag, size = 0x8, scoped, tag = 'scoped memory for projection_forward.1']
    #allocation5 [shape = 'u8[1572864]{0}', space=vmem, size = 0x180000, scoped, tag = 'input window, operand 1']
    #allocation6 [shape = 's32[2]{0}', space=sflag, size = 0x8, scoped, tag = 'scoped memory for projection_forward.1']
    #allocation7 [shape = 'u8[4096]{0}', space=vmem, size = 0x1000, scoped, tag = 'input window, operand 2']
    #allocation8 [shape = 'u8[32768]{0}', space=vmem, size = 0x8000, scoped, tag = 'output window, operand 0']
    %8 = vsyncpa [#allocation3], 0
    %9 = vsyncpa [#allocation6], 0
    %s10 = scalar_lea.sflag [#allocation6], 1
    %11 = vsyncpa %s10, 0
    %12 = vsyncpa [#allocation4], 0
    %s13 = scalar_lea.sflag [#allocation4], 1
    %14 = vsyncpa %s13, 0
    loop: start=0, step=1, limit=4
    $region2: #{projection_forward.1} parent=1 // loop_pre_header
      _
    $region3: #{projection_forward.1} parent=1 // loop_header
      %s16 = sphi 0, %s20
      %p17 = scmp.ge.s32.totalorder %s16, 4
      %s23 = sphi 0, %s35
      %s24 = sphi 0, %s31
      %s25 = sphi 0, %s23
      %s26 = sphi 0, %s24
      %s27 = sphi 0, %s25
      %s28 = sphi 0, %s26
      %s38 = sphi 0, %s40
      %s41 = sphi 0, %s38
      %s42 = sphi 0, %s41
      %s58 = sphi 0, %s42
      %s64 = sphi 0, %s66
      %s67 = sphi 0, %s64
      %s68 = sphi 0, %s67
      %s84 = sphi 0, %s68
      %s90 = sphi 0, %s92
      %s93 = sphi 0, %s90
      %s94 = sphi 0, %s93
      %s110 = sphi 0, %s94
      %s118 = sphi 0, %s120
      %s121 = sphi 0, %s118
      %s122 = sphi 0, %s121
      %s138 = sphi 0, %s122
    $region4: #{projection_forward.1} parent=1 // loop_header_branch
      %19 = sbr.rel (%p17) target = $region8
    $region5: #{projection_forward.1} parent=1 // loop_body
      %s21 = ssub.s32 %s16, 1
      %s22 = ssub.s32 %s16, 2
      %s29 = sadd.s32 1, %s24
      %p30 = scmp.ge.s32.totalorder %s29, 2
      %s31 = scalar_select %p30, 0, %s29
      %s32 = sadd.s32 1, %s23
      %s33 = scalar_select %p30, %s32, %s23
      %p34 = scmp.ge.s32.totalorder %s33, 1
      %s35 = scalar_select %p34, 0, %s33
      %s36 = ssub.s32 %s23, %s35
      %p37 = scmp.eq.s32.totalorder %s36, 0
      %s39 = sadd.s32 %s38, 1
      %s40 = scalar_select %p37, %s38, %s39
      %p43 = pneg %p37
      %p44 = scmp.eq.s32.totalorder %s16, 1
      %p45 = por %p43, %p44
      %p46 = scmp.ne.s32.totalorder %s38, %s41
      %p47 = scmp.eq.s32.totalorder %s16, 0
      %p48 = por %p46, %p47
      %p49 = scmp.ne.s32.totalorder %s38, %s41
      %p50 = scmp.eq.s32.totalorder %s21, 1
      %p51 = por %p49, %p50
      %p52 = scmp.ne.s32.totalorder %s41, %s42
      %p53 = scmp.eq.s32.totalorder %s21, 0
      %p54 = por %p52, %p53
      %p55 = scmp.ne.s32.totalorder %s41, %s42
      %p56 = scmp.eq.s32.totalorder %s22, 1
      %p57 = por %p55, %p56
      %p59 = scmp.ne.s32.totalorder %s42, %s58
      %p60 = scmp.eq.s32.totalorder %s22, 0
      %p61 = por %p59, %p60
      %s62 = ssub.s32 %s24, %s31
      %p63 = scmp.eq.s32.totalorder %s62, 0
      %s65 = sadd.s32 %s64, 1
      %s66 = scalar_select %p63, %s64, %s65
      %p69 = pneg %p63
      %p70 = scmp.eq.s32.totalorder %s16, 1
      %p71 = por %p69, %p70
      %p72 = scmp.ne.s32.totalorder %s64, %s67
      %p73 = scmp.eq.s32.totalorder %s16, 0
      %p74 = por %p72, %p73
      %p75 = scmp.ne.s32.totalorder %s64, %s67
      %p76 = scmp.eq.s32.totalorder %s21, 1
      %p77 = por %p75, %p76
      %p78 = scmp.ne.s32.totalorder %s67, %s68
      %p79 = scmp.eq.s32.totalorder %s21, 0
      %p80 = por %p78, %p79
      %p81 = scmp.ne.s32.totalorder %s67, %s68
      %p82 = scmp.eq.s32.totalorder %s22, 1
      %p83 = por %p81, %p82
      %p85 = scmp.ne.s32.totalorder %s68, %s84
      %p86 = scmp.eq.s32.totalorder %s22, 0
      %p87 = por %p85, %p86
      %s88 = ssub.s32 %s24, %s31
      %p89 = scmp.eq.s32.totalorder %s88, 0
      %s91 = sadd.s32 %s90, 1
      %s92 = scalar_select %p89, %s90, %s91
      %p95 = pneg %p89
      %p96 = scmp.eq.s32.totalorder %s16, 1
      %p97 = por %p95, %p96
      %p98 = scmp.ne.s32.totalorder %s90, %s93
      %p99 = scmp.eq.s32.totalorder %s16, 0
      %p100 = por %p98, %p99
      %p101 = scmp.ne.s32.totalorder %s90, %s93
      %p102 = scmp.eq.s32.totalorder %s21, 1
      %p103 = por %p101, %p102
      %p104 = scmp.ne.s32.totalorder %s93, %s94
      %p105 = scmp.eq.s32.totalorder %s21, 0
      %p106 = por %p104, %p105
      %p107 = scmp.ne.s32.totalorder %s93, %s94
      %p108 = scmp.eq.s32.totalorder %s22, 1
      %p109 = por %p107, %p108
      %p111 = scmp.ne.s32.totalorder %s94, %s110
      %p112 = scmp.eq.s32.totalorder %s22, 0
      %p113 = por %p111, %p112
      %s114 = ssub.s32 %s23, %s35
      %s115 = ssub.s32 %s24, %s31
      %s116 = sor.u32 %s114, %s115
      %p117 = scmp.eq.s32.totalorder %s116, 0
      %s119 = sadd.s32 %s118, 1
      %s120 = scalar_select %p117, %s118, %s119
      %p123 = pneg %p117
      %p124 = scmp.eq.s32.totalorder %s16, 1
      %p125 = por %p123, %p124
      %p126 = scmp.ne.s32.totalorder %s118, %s121
      %p127 = scmp.eq.s32.totalorder %s16, 0
      %p128 = por %p126, %p127
      %p129 = scmp.ne.s32.totalorder %s118, %s121
      %p130 = scmp.eq.s32.totalorder %s21, 1
      %p131 = por %p129, %p130
      %p132 = scmp.ne.s32.totalorder %s121, %s122
      %p133 = scmp.eq.s32.totalorder %s21, 0
      %p134 = por %p132, %p133
      %p135 = scmp.ne.s32.totalorder %s121, %s122
      %p136 = scmp.eq.s32.totalorder %s22, 1
      %p137 = por %p135, %p136
      %p139 = scmp.ne.s32.totalorder %s122, %s138
      %p140 = scmp.eq.s32.totalorder %s22, 0
      %p141 = por %p139, %p140
      %p142 = scmp.le.s32.totalorder 1, %s16
      %p143 = scmp.lt.s32.totalorder %s16, 3
      %p144 = pnand %p142, %p143
      %p145 = pneg %p144
      // Predicated region
      $region9: #{projection_forward.1} parent=5 // pred_check
        _
      $region10: #{projection_forward.1} parent=5 // pred_check_branch
        %147 = sbr.rel (%p144) target = $region12
      $region11: #{projection_forward.1} parent=5 // pred_region
        %s148 = ssub.s32 %s16, 1
        // Predicated region
        $region13: #{projection_forward.1} parent=11 // pred_check
          %p149 = pneg %p54
        $region14: #{projection_forward.1} parent=11 // pred_check_branch
          %151 = sbr.rel (%p149) target = $region16
        $region15: #{projection_forward.1} parent=11 // pred_region
          %s152 = smul.u32 2, %s25
          %s154 = ssub.s32 768, 768
          %155 = vsyncadd [#allocation3], %s154
          %s156 = smul.addr %s152, 6
          %s157 = smul.addr %s156, 64
          %s158 = scalar_lea.hbm %s0, %s157
          %s159 = sshll.u32 [#allocation2], 4
          %s160 = int_to_ptr.vmem [resolvable:$true] %s159
          %165 = dma.hbm_to_vmem [thread:$0]  %s158, 768, %s160, [#allocation3], 384, 384, 24
        $region16: #{projection_forward.1} parent=11 // pred_fallthru
          _
      $region12: #{projection_forward.1} parent=5 // pred_fallthru
        _
      %p166 = scmp.lt.s32.totalorder %s16, 2
      // Predicated region
      $region17: #{projection_forward.1} parent=5 // pred_check
        %p167 = pneg %p166
      $region18: #{projection_forward.1} parent=5 // pred_check_branch
        %169 = sbr.rel (%p167) target = $region20
      $region19: #{projection_forward.1} parent=5 // pred_region
        // Predicated region
        $region21: #{projection_forward.1} parent=19 // pred_check
          %p170 = pneg %p74
        $region22: #{projection_forward.1} parent=19 // pred_check_branch
          %172 = sbr.rel (%p170) target = $region24
        $region23: #{projection_forward.1} parent=19 // pred_region
          %s173 = sand.u32 %s16, 1
          %s174 = scalar_lea.sflag [#allocation6], %s173
          %s175 = sand.u32 %s64, 1
          %s176 = smul.addr %s175, 1536
          %s177 = scalar_lea.vmem [#allocation5], %s176
          %s178 = smul.u32 4, %s24
          %s180 = ssub.s32 24576, 24576
          %181 = vsyncadd %s174, %s180
          %s182 = smul.addr %s178, 64
          %s183 = scalar_lea.hbm %s1, %s182
          %s184 = sshll.u32 %s177, 4
          %s185 = int_to_ptr.vmem [resolvable:$true] %s184
          %190 = dma.hbm_to_vmem [thread:$0]  %s183, 24576, %s185, %s174, 512, 256, 16
        $region24: #{projection_forward.1} parent=19 // pred_fallthru
          _
        // Predicated region
        $region25: #{projection_forward.1} parent=19 // pred_check
          %p191 = pneg %p100
        $region26: #{projection_forward.1} parent=19 // pred_check_branch
          %193 = sbr.rel (%p191) target = $region28
        $region27: #{projection_forward.1} parent=19 // pred_region
          %s194 = sand.u32 %s16, 1
          %s195 = scalar_lea.sflag [#allocation6], %s194
          %s196 = sand.u32 %s90, 1
          %s197 = smul.addr %s196, 4
          %s198 = scalar_lea.vmem [#allocation7], %s197
          %s199 = smul.u32 4, %s24
          %s201 = ssub.s32 64, 64
          %202 = vsyncadd %s195, %s201
          %s203 = smul.addr %s199, 16
          %s204 = scalar_lea.hbm %s2, %s203
          %s206 = sshll.u32 %s198, 4
          %s207 = int_to_ptr.vmem [resolvable:$true] %s206
          %209 = dma.hbm_to_vmem [thread:$0]  %s204, 64, %s207, %s195
        $region28: #{projection_forward.1} parent=19 // pred_fallthru
          _
      $region20: #{projection_forward.1} parent=5 // pred_fallthru
        _
      %p210 = scmp.le.s32.totalorder 1, %s16
      %p211 = scmp.lt.s32.totalorder %s16, 3
      %p212 = pnand %p210, %p211
      %p213 = pneg %p212
      // Predicated region
      $region29: #{projection_forward.1} parent=5 // pred_check
        _
      $region30: #{projection_forward.1} parent=5 // pred_check_branch
        %215 = sbr.rel (%p212) target = $region32
      $region31: #{projection_forward.1} parent=5 // pred_region
        %s216 = ssub.s32 %s16, 1
        // Predicated region
        $region33: #{projection_forward.1} parent=31 // pred_check
          %p217 = pneg %p54
        $region34: #{projection_forward.1} parent=31 // pred_check_branch
          %219 = sbr.rel (%p217) target = $region36
        $region35: #{projection_forward.1} parent=31 // pred_region
          %220 = dma.done [#allocation3], 768
        $region36: #{projection_forward.1} parent=31 // pred_fallthru
          _
        %s221 = sand.u32 %s21, 1
        %s222 = scalar_lea.sflag [#allocation6], %s221
        %s223 = sand.u32 %s67, 1
        %s224 = smul.addr %s223, 1536
        %s225 = scalar_lea.vmem [#allocation5], %s224
        // Predicated region
        $region37: #{projection_forward.1} parent=31 // pred_check
          %p226 = pneg %p80
        $region38: #{projection_forward.1} parent=31 // pred_check_branch
          %228 = sbr.rel (%p226) target = $region40
        $region39: #{projection_forward.1} parent=31 // pred_region
          %229 = dma.done %s222, 24576
        $region40: #{projection_forward.1} parent=31 // pred_fallthru
          _
        %s230 = sand.u32 %s21, 1
        %s231 = scalar_lea.sflag [#allocation6], %s230
        %s232 = sand.u32 %s93, 1
        %s233 = smul.addr %s232, 4
        %s234 = scalar_lea.vmem [#allocation7], %s233
        // Predicated region
        $region41: #{projection_forward.1} parent=31 // pred_check
          %p235 = pneg %p106
        $region42: #{projection_forward.1} parent=31 // pred_check_branch
          %237 = sbr.rel (%p235) target = $region44
        $region43: #{projection_forward.1} parent=31 // pred_region
          %238 = dma.done %s231, 64
        $region44: #{projection_forward.1} parent=31 // pred_fallthru
          _
        %p239 = pneg %p54
        %p240 = pneg %p51
        %s241 = sand.u32 %s21, 1
        %s242 = scalar_lea.sflag [#allocation6], %s241
        %s243 = sand.u32 %s67, 1
        %s244 = smul.addr %s243, 1536
        %s245 = scalar_lea.vmem [#allocation5], %s244
        %p246 = pneg %p80
        %p247 = pneg %p77
        %s248 = sand.u32 %s21, 1
        %s249 = scalar_lea.sflag [#allocation6], %s248
        %s250 = sand.u32 %s93, 1
        %s251 = smul.addr %s250, 4
        %s252 = scalar_lea.vmem [#allocation7], %s251
        %p253 = pneg %p106
        %p254 = pneg %p103
        %p255 = pneg %p134
        %p256 = pneg %p131
        %s257 = sand.u32 %s121, 1
        %s258 = scalar_lea.sflag [#allocation4], %s257
        %s259 = sand.u32 %s121, 1
        %s260 = smul.addr %s259, 32
        %s261 = scalar_lea.vmem [#allocation8], %s260
        %s262 = smul.u32 2, %s25
        %s263 = smul.u32 4, %s26
        %s264 = smul.u32 4, %s26
        %s265 = smul.u32 2, %s25
        %s266 = smul.u32 4, %s26
        %v267 = vld [vmem:[#allocation2] sm:$0xff]
        %v268 = vld [vmem:[#allocation2 + $0x8] sm:$0xff]
        %v269 = vld [vmem:[#allocation2 + $0x10] sm:$0xff]
        %v270 = vld [vmem:[#allocation2 + $0x18] sm:$0xff]
        %v271 = vld [vmem:[#allocation2 + $0x20] sm:$0xff]
        %v272 = vld [vmem:[#allocation2 + $0x28] sm:$0xff]
        %v273 = vld [vmem:[%s225] sm:$0xff]
        %v274 = vld [vmem:[%s225 + $0x8] sm:$0xff]
        %v275 = vld [vmem:[%s225 + $0x10] sm:$0xff]
        %v276 = vld [vmem:[%s225 + $0x18] sm:$0xff]
        %v277 = vld [vmem:[%s225 + $0x20] sm:$0xff]
        %v278 = vld [vmem:[%s225 + $0x28] sm:$0xff]
        %v279 = vld [vmem:[%s225 + $0x30] sm:$0xff]
        %v280 = vld [vmem:[%s225 + $0x38] sm:$0xff]
        %v281 = vld [vmem:[%s225 + $0x40] sm:$0xff]
        %v282 = vld [vmem:[%s225 + $0x48] sm:$0xff]
        %v283 = vld [vmem:[%s225 + $0x50] sm:$0xff]
        %v284 = vld [vmem:[%s225 + $0x58] sm:$0xff]
        %v285 = vld [vmem:[%s225 + $0x60] sm:$0xff]
        %v286 = vld [vmem:[%s225 + $0x68] sm:$0xff]
        %v287 = vld [vmem:[%s225 + $0x70] sm:$0xff]
        %v288 = vld [vmem:[%s225 + $0x78] sm:$0xff]
        %v289 = vld [vmem:[%s225 + $0x80] sm:$0xff]
        %v290 = vld [vmem:[%s225 + $0x88] sm:$0xff]
        %v291 = vld [vmem:[%s225 + $0x90] sm:$0xff]
        %v292 = vld [vmem:[%s225 + $0x98] sm:$0xff]
        %v293 = vld [vmem:[%s225 + $0xa0] sm:$0xff]
        %v294 = vld [vmem:[%s225 + $0xa8] sm:$0xff]
        %v295 = vld [vmem:[%s225 + $0xb0] sm:$0xff]
        %v296 = vld [vmem:[%s225 + $0xb8] sm:$0xff]
        %v297 = vld [vmem:[%s225 + $0xc0] sm:$0xff]
        %v298 = vld [vmem:[%s225 + $0xc8] sm:$0xff]
        %v299 = vld [vmem:[%s225 + $0xd0] sm:$0xff]
        %v300 = vld [vmem:[%s225 + $0xd8] sm:$0xff]
        %v301 = vld [vmem:[%s225 + $0xe0] sm:$0xff]
        %v302 = vld [vmem:[%s225 + $0xe8] sm:$0xff]
        %v303 = vld [vmem:[%s225 + $0xf0] sm:$0xff]
        %v304 = vld [vmem:[%s225 + $0xf8] sm:$0xff]
        %v305 = vld [vmem:[%s225 + $0x100] sm:$0xff]
        %v306 = vld [vmem:[%s225 + $0x108] sm:$0xff]
        %v307 = vld [vmem:[%s225 + $0x110] sm:$0xff]
        %v308 = vld [vmem:[%s225 + $0x118] sm:$0xff]
        %v309 = vld [vmem:[%s225 + $0x120] sm:$0xff]
        %v310 = vld [vmem:[%s225 + $0x128] sm:$0xff]
        %v311 = vld [vmem:[%s225 + $0x130] sm:$0xff]
        %v312 = vld [vmem:[%s225 + $0x138] sm:$0xff]
        %v313 = vld [vmem:[%s225 + $0x140] sm:$0xff]
        %v314 = vld [vmem:[%s225 + $0x148] sm:$0xff]
        %v315 = vld [vmem:[%s225 + $0x150] sm:$0xff]
        %v316 = vld [vmem:[%s225 + $0x158] sm:$0xff]
        %v317 = vld [vmem:[%s225 + $0x160] sm:$0xff]
        %v318 = vld [vmem:[%s225 + $0x168] sm:$0xff]
        %v319 = vld [vmem:[%s225 + $0x170] sm:$0xff]
        %v320 = vld [vmem:[%s225 + $0x178] sm:$0xff]
        %v321 = vld [vmem:[%s225 + $0x180] sm:$0xff]
        %v322 = vld [vmem:[%s225 + $0x188] sm:$0xff]
        %v323 = vld [vmem:[%s225 + $0x190] sm:$0xff]
        %v324 = vld [vmem:[%s225 + $0x198] sm:$0xff]
        %v325 = vld [vmem:[%s225 + $0x1a0] sm:$0xff]
        %v326 = vld [vmem:[%s225 + $0x1a8] sm:$0xff]
        %v327 = vld [vmem:[%s225 + $0x1b0] sm:$0xff]
        %v328 = vld [vmem:[%s225 + $0x1b8] sm:$0xff]
        %v329 = vld [vmem:[%s225 + $0x1c0] sm:$0xff]
        %v330 = vld [vmem:[%s225 + $0x1c8] sm:$0xff]
        %v331 = vld [vmem:[%s225 + $0x1d0] sm:$0xff]
        %v332 = vld [vmem:[%s225 + $0x1d8] sm:$0xff]
        %v333 = vld [vmem:[%s225 + $0x1e0] sm:$0xff]
        %v334 = vld [vmem:[%s225 + $0x1e8] sm:$0xff]
        %v335 = vld [vmem:[%s225 + $0x1f0] sm:$0xff]
        %v336 = vld [vmem:[%s225 + $0x1f8] sm:$0xff]
        %v337 = vld [vmem:[%s225 + $0x200] sm:$0xff]
        %v338 = vld [vmem:[%s225 + $0x208] sm:$0xff]
        %v339 = vld [vmem:[%s225 + $0x210] sm:$0xff]
        %v340 = vld [vmem:[%s225 + $0x218] sm:$0xff]
        %v341 = vld [vmem:[%s225 + $0x220] sm:$0xff]
        %v342 = vld [vmem:[%s225 + $0x228] sm:$0xff]
        %v343 = vld [vmem:[%s225 + $0x230] sm:$0xff]
        %v344 = vld [vmem:[%s225 + $0x238] sm:$0xff]
        %v345 = vld [vmem:[%s225 + $0x240] sm:$0xff]
        %v346 = vld [vmem:[%s225 + $0x248] sm:$0xff]
        %v347 = vld [vmem:[%s225 + $0x250] sm:$0xff]
        %v348 = vld [vmem:[%s225 + $0x258] sm:$0xff]
        %v349 = vld [vmem:[%s225 + $0x260] sm:$0xff]
        %v350 = vld [vmem:[%s225 + $0x268] sm:$0xff]
        %v351 = vld [vmem:[%s225 + $0x270] sm:$0xff]
        %v352 = vld [vmem:[%s225 + $0x278] sm:$0xff]
        %v353 = vld [vmem:[%s225 + $0x280] sm:$0xff]
        %v354 = vld [vmem:[%s225 + $0x288] sm:$0xff]
        %v355 = vld [vmem:[%s225 + $0x290] sm:$0xff]
        %v356 = vld [vmem:[%s225 + $0x298] sm:$0xff]
        %v357 = vld [vmem:[%s225 + $0x2a0] sm:$0xff]
        %v358 = vld [vmem:[%s225 + $0x2a8] sm:$0xff]
        %v359 = vld [vmem:[%s225 + $0x2b0] sm:$0xff]
        %v360 = vld [vmem:[%s225 + $0x2b8] sm:$0xff]
        %v361 = vld [vmem:[%s225 + $0x2c0] sm:$0xff]
        %v362 = vld [vmem:[%s225 + $0x2c8] sm:$0xff]
        %v363 = vld [vmem:[%s225 + $0x2d0] sm:$0xff]
        %v364 = vld [vmem:[%s225 + $0x2d8] sm:$0xff]
        %v365 = vld [vmem:[%s225 + $0x2e0] sm:$0xff]
        %v366 = vld [vmem:[%s225 + $0x2e8] sm:$0xff]
        %v367 = vld [vmem:[%s225 + $0x2f0] sm:$0xff]
        %v368 = vld [vmem:[%s225 + $0x2f8] sm:$0xff]
        %v369 = vld [vmem:[%s225 + $0x300] sm:$0xff]
        %v370 = vld [vmem:[%s225 + $0x308] sm:$0xff]
        %v371 = vld [vmem:[%s225 + $0x310] sm:$0xff]
        %v372 = vld [vmem:[%s225 + $0x318] sm:$0xff]
        %v373 = vld [vmem:[%s225 + $0x320] sm:$0xff]
        %v374 = vld [vmem:[%s225 + $0x328] sm:$0xff]
        %v375 = vld [vmem:[%s225 + $0x330] sm:$0xff]
        %v376 = vld [vmem:[%s225 + $0x338] sm:$0xff]
        %v377 = vld [vmem:[%s225 + $0x340] sm:$0xff]
        %v378 = vld [vmem:[%s225 + $0x348] sm:$0xff]
        %v379 = vld [vmem:[%s225 + $0x350] sm:$0xff]
        %v380 = vld [vmem:[%s225 + $0x358] sm:$0xff]
        %v381 = vld [vmem:[%s225 + $0x360] sm:$0xff]
        %v382 = vld [vmem:[%s225 + $0x368] sm:$0xff]
        %v383 = vld [vmem:[%s225 + $0x370] sm:$0xff]
        %v384 = vld [vmem:[%s225 + $0x378] sm:$0xff]
        %v385 = vld [vmem:[%s225 + $0x380] sm:$0xff]
        %v386 = vld [vmem:[%s225 + $0x388] sm:$0xff]
        %v387 = vld [vmem:[%s225 + $0x390] sm:$0xff]
        %v388 = vld [vmem:[%s225 + $0x398] sm:$0xff]
        %v389 = vld [vmem:[%s225 + $0x3a0] sm:$0xff]
        %v390 = vld [vmem:[%s225 + $0x3a8] sm:$0xff]
        %v391 = vld [vmem:[%s225 + $0x3b0] sm:$0xff]
        %v392 = vld [vmem:[%s225 + $0x3b8] sm:$0xff]
        %v393 = vld [vmem:[%s225 + $0x3c0] sm:$0xff]
        %v394 = vld [vmem:[%s225 + $0x3c8] sm:$0xff]
        %v395 = vld [vmem:[%s225 + $0x3d0] sm:$0xff]
        %v396 = vld [vmem:[%s225 + $0x3d8] sm:$0xff]
        %v397 = vld [vmem:[%s225 + $0x3e0] sm:$0xff]
        %v398 = vld [vmem:[%s225 + $0x3e8] sm:$0xff]
        %v399 = vld [vmem:[%s225 + $0x3f0] sm:$0xff]
        %v400 = vld [vmem:[%s225 + $0x3f8] sm:$0xff]
        %v401 = vld [vmem:[%s225 + $0x400] sm:$0xff]
        %v402 = vld [vmem:[%s225 + $0x408] sm:$0xff]
        %v403 = vld [vmem:[%s225 + $0x410] sm:$0xff]
        %v404 = vld [vmem:[%s225 + $0x418] sm:$0xff]
        %v405 = vld [vmem:[%s225 + $0x420] sm:$0xff]
        %v406 = vld [vmem:[%s225 + $0x428] sm:$0xff]
        %v407 = vld [vmem:[%s225 + $0x430] sm:$0xff]
        %v408 = vld [vmem:[%s225 + $0x438] sm:$0xff]
        %v409 = vld [vmem:[%s225 + $0x440] sm:$0xff]
        %v410 = vld [vmem:[%s225 + $0x448] sm:$0xff]
        %v411 = vld [vmem:[%s225 + $0x450] sm:$0xff]
        %v412 = vld [vmem:[%s225 + $0x458] sm:$0xff]
        %v413 = vld [vmem:[%s225 + $0x460] sm:$0xff]
        %v414 = vld [vmem:[%s225 + $0x468] sm:$0xff]
        %v415 = vld [vmem:[%s225 + $0x470] sm:$0xff]
        %v416 = vld [vmem:[%s225 + $0x478] sm:$0xff]
        %v417 = vld [vmem:[%s225 + $0x480] sm:$0xff]
        %v418 = vld [vmem:[%s225 + $0x488] sm:$0xff]
        %v419 = vld [vmem:[%s225 + $0x490] sm:$0xff]
        %v420 = vld [vmem:[%s225 + $0x498] sm:$0xff]
        %v421 = vld [vmem:[%s225 + $0x4a0] sm:$0xff]
        %v422 = vld [vmem:[%s225 + $0x4a8] sm:$0xff]
        %v423 = vld [vmem:[%s225 + $0x4b0] sm:$0xff]
        %v424 = vld [vmem:[%s225 + $0x4b8] sm:$0xff]
        %v425 = vld [vmem:[%s225 + $0x4c0] sm:$0xff]
        %v426 = vld [vmem:[%s225 + $0x4c8] sm:$0xff]
        %v427 = vld [vmem:[%s225 + $0x4d0] sm:$0xff]
        %v428 = vld [vmem:[%s225 + $0x4d8] sm:$0xff]
        %v429 = vld [vmem:[%s225 + $0x4e0] sm:$0xff]
        %v430 = vld [vmem:[%s225 + $0x4e8] sm:$0xff]
        %v431 = vld [vmem:[%s225 + $0x4f0] sm:$0xff]
        %v432 = vld [vmem:[%s225 + $0x4f8] sm:$0xff]
        %v433 = vld [vmem:[%s225 + $0x500] sm:$0xff]
        %v434 = vld [vmem:[%s225 + $0x508] sm:$0xff]
        %v435 = vld [vmem:[%s225 + $0x510] sm:$0xff]
        %v436 = vld [vmem:[%s225 + $0x518] sm:$0xff]
        %v437 = vld [vmem:[%s225 + $0x520] sm:$0xff]
        %v438 = vld [vmem:[%s225 + $0x528] sm:$0xff]
        %v439 = vld [vmem:[%s225 + $0x530] sm:$0xff]
        %v440 = vld [vmem:[%s225 + $0x538] sm:$0xff]
        %v441 = vld [vmem:[%s225 + $0x540] sm:$0xff]
        %v442 = vld [vmem:[%s225 + $0x548] sm:$0xff]
        %v443 = vld [vmem:[%s225 + $0x550] sm:$0xff]
        %v444 = vld [vmem:[%s225 + $0x558] sm:$0xff]
        %v445 = vld [vmem:[%s225 + $0x560] sm:$0xff]
        %v446 = vld [vmem:[%s225 + $0x568] sm:$0xff]
        %v447 = vld [vmem:[%s225 + $0x570] sm:$0xff]
        %v448 = vld [vmem:[%s225 + $0x578] sm:$0xff]
        %v449 = vld [vmem:[%s225 + $0x580] sm:$0xff]
        %v450 = vld [vmem:[%s225 + $0x588] sm:$0xff]
        %v451 = vld [vmem:[%s225 + $0x590] sm:$0xff]
        %v452 = vld [vmem:[%s225 + $0x598] sm:$0xff]
        %v453 = vld [vmem:[%s225 + $0x5a0] sm:$0xff]
        %v454 = vld [vmem:[%s225 + $0x5a8] sm:$0xff]
        %v455 = vld [vmem:[%s225 + $0x5b0] sm:$0xff]
        %v456 = vld [vmem:[%s225 + $0x5b8] sm:$0xff]
        %v457 = vld [vmem:[%s225 + $0x5c0] sm:$0xff]
        %v458 = vld [vmem:[%s225 + $0x5c8] sm:$0xff]
        %v459 = vld [vmem:[%s225 + $0x5d0] sm:$0xff]
        %v460 = vld [vmem:[%s225 + $0x5d8] sm:$0xff]
        %v461 = vld [vmem:[%s225 + $0x5e0] sm:$0xff]
        %v462 = vld [vmem:[%s225 + $0x5e8] sm:$0xff]
        %v463 = vld [vmem:[%s225 + $0x5f0] sm:$0xff]
        %v464 = vld [vmem:[%s225 + $0x5f8] sm:$0xff]
        %v465 = vld [vmem:[%s234] sm:$0xf]
        %v467 = vlaneseq
        %v468 = vshrl.u32 %v467, 7
        %v469 = vsub.s32 0, %v468
        %v470 = vrot.slane %v465, %v469
        %v471 = vlaneseq
        %v472 = vshrl.u32 %v471, 7
        %v473 = vsub.s32 1, %v472
        %v474 = vrot.slane %v465, %v473
        %v475 = vlaneseq
        %v476 = vshrl.u32 %v475, 7
        %v477 = vsub.s32 2, %v476
        %v478 = vrot.slane %v465, %v477
        %v479 = vlaneseq
        %v480 = vshrl.u32 %v479, 7
        %v481 = vsub.s32 3, %v480
        %v482 = vrot.slane %v465, %v481
        %v493 = vunpack.c.l.b16 %v267
        %v494 = vunpack.c.h.b16 %v267
        %v495 = vunpack.c.l.b16 %v268
        %v496 = vunpack.c.h.b16 %v268
        %v497 = vunpack.c.l.b16 %v269
        %v498 = vunpack.c.h.b16 %v269
        %v499 = vunpack.c.l.b16 %v270
        %v500 = vunpack.c.h.b16 %v270
        %v501 = vunpack.c.l.b16 %v271
        %v502 = vunpack.c.h.b16 %v271
        %v503 = vunpack.c.l.b16 %v272
        %v504 = vunpack.c.h.b16 %v272
        %v505 = vpack.c.b16 %v499, %v493
        %v506 = vpack.c.b16 %v500, %v494
        %v507 = vpack.c.b16 %v501, %v495
        %v508 = vpack.c.b16 %v502, %v496
        %v509 = vpack.c.b16 %v503, %v497
        %v510 = vpack.c.b16 %v504, %v498
        %v709 = vunpack.c.l.b16 %v273
        %v710 = vunpack.c.h.b16 %v273
        %v711 = vunpack.c.l.b16 %v274
        %v712 = vunpack.c.h.b16 %v274
        %v713 = vunpack.c.l.b16 %v275
        %v714 = vunpack.c.h.b16 %v275
        %v715 = vunpack.c.l.b16 %v276
        %v716 = vunpack.c.h.b16 %v276
        %v717 = vunpack.c.l.b16 %v277
        %v718 = vunpack.c.h.b16 %v277
        %v719 = vunpack.c.l.b16 %v278
        %v720 = vunpack.c.h.b16 %v278
        %v721 = vunpack.c.l.b16 %v279
        %v722 = vunpack.c.h.b16 %v279
        %v723 = vunpack.c.l.b16 %v280
        %v724 = vunpack.c.h.b16 %v280
        %v725 = vunpack.c.l.b16 %v281
        %v726 = vunpack.c.h.b16 %v281
        %v727 = vunpack.c.l.b16 %v282
        %v728 = vunpack.c.h.b16 %v282
        %v729 = vunpack.c.l.b16 %v283
        %v730 = vunpack.c.h.b16 %v283
        %v731 = vunpack.c.l.b16 %v284
        %v732 = vunpack.c.h.b16 %v284
        %v733 = vunpack.c.l.b16 %v285
        %v734 = vunpack.c.h.b16 %v285
        %v735 = vunpack.c.l.b16 %v286
        %v736 = vunpack.c.h.b16 %v286
        %v737 = vunpack.c.l.b16 %v287
        %v738 = vunpack.c.h.b16 %v287
        %v739 = vunpack.c.l.b16 %v288
        %v740 = vunpack.c.h.b16 %v288
        %v741 = vunpack.c.l.b16 %v289
        %v742 = vunpack.c.h.b16 %v289
        %v743 = vunpack.c.l.b16 %v290
        %v744 = vunpack.c.h.b16 %v290
        %v745 = vunpack.c.l.b16 %v291
        %v746 = vunpack.c.h.b16 %v291
        %v747 = vunpack.c.l.b16 %v292
        %v748 = vunpack.c.h.b16 %v292
        %v749 = vunpack.c.l.b16 %v293
        %v750 = vunpack.c.h.b16 %v293
        %v751 = vunpack.c.l.b16 %v294
        %v752 = vunpack.c.h.b16 %v294
        %v753 = vunpack.c.l.b16 %v295
        %v754 = vunpack.c.h.b16 %v295
        %v755 = vunpack.c.l.b16 %v296
        %v756 = vunpack.c.h.b16 %v296
        %v757 = vunpack.c.l.b16 %v297
        %v758 = vunpack.c.h.b16 %v297
        %v759 = vunpack.c.l.b16 %v298
        %v760 = vunpack.c.h.b16 %v298
        %v761 = vunpack.c.l.b16 %v299
        %v762 = vunpack.c.h.b16 %v299
        %v763 = vunpack.c.l.b16 %v300
        %v764 = vunpack.c.h.b16 %v300
        %v765 = vunpack.c.l.b16 %v301
        %v766 = vunpack.c.h.b16 %v301
        %v767 = vunpack.c.l.b16 %v302
        %v768 = vunpack.c.h.b16 %v302
        %v769 = vunpack.c.l.b16 %v303
        %v770 = vunpack.c.h.b16 %v303
        %v771 = vunpack.c.l.b16 %v304
        %v772 = vunpack.c.h.b16 %v304
        %v773 = vunpack.c.l.b16 %v305
        %v774 = vunpack.c.h.b16 %v305
        %v775 = vunpack.c.l.b16 %v306
        %v776 = vunpack.c.h.b16 %v306
        %v777 = vunpack.c.l.b16 %v307
        %v778 = vunpack.c.h.b16 %v307
        %v779 = vunpack.c.l.b16 %v308
        %v780 = vunpack.c.h.b16 %v308
        %v781 = vunpack.c.l.b16 %v309
        %v782 = vunpack.c.h.b16 %v309
        %v783 = vunpack.c.l.b16 %v310
        %v784 = vunpack.c.h.b16 %v310
        %v785 = vunpack.c.l.b16 %v311
        %v786 = vunpack.c.h.b16 %v311
        %v787 = vunpack.c.l.b16 %v312
        %v788 = vunpack.c.h.b16 %v312
        %v789 = vunpack.c.l.b16 %v313
        %v790 = vunpack.c.h.b16 %v313
        %v791 = vunpack.c.l.b16 %v314
        %v792 = vunpack.c.h.b16 %v314
        %v793 = vunpack.c.l.b16 %v315
        %v794 = vunpack.c.h.b16 %v315
        %v795 = vunpack.c.l.b16 %v316
        %v796 = vunpack.c.h.b16 %v316
        %v797 = vunpack.c.l.b16 %v317
        %v798 = vunpack.c.h.b16 %v317
        %v799 = vunpack.c.l.b16 %v318
        %v800 = vunpack.c.h.b16 %v318
        %v801 = vunpack.c.l.b16 %v319
        %v802 = vunpack.c.h.b16 %v319
        %v803 = vunpack.c.l.b16 %v320
        %v804 = vunpack.c.h.b16 %v320
        %v805 = vunpack.c.l.b16 %v321
        %v806 = vunpack.c.h.b16 %v321
        %v807 = vunpack.c.l.b16 %v322
        %v808 = vunpack.c.h.b16 %v322
        %v809 = vunpack.c.l.b16 %v323
        %v810 = vunpack.c.h.b16 %v323
        %v811 = vunpack.c.l.b16 %v324
        %v812 = vunpack.c.h.b16 %v324
        %v813 = vunpack.c.l.b16 %v325
        %v814 = vunpack.c.h.b16 %v325
        %v815 = vunpack.c.l.b16 %v326
        %v816 = vunpack.c.h.b16 %v326
        %v817 = vunpack.c.l.b16 %v327
        %v818 = vunpack.c.h.b16 %v327
        %v819 = vunpack.c.l.b16 %v328
        %v820 = vunpack.c.h.b16 %v328
        %v821 = vunpack.c.l.b16 %v329
        %v822 = vunpack.c.h.b16 %v329
        %v823 = vunpack.c.l.b16 %v330
        %v824 = vunpack.c.h.b16 %v330
        %v825 = vunpack.c.l.b16 %v331
        %v826 = vunpack.c.h.b16 %v331
        %v827 = vunpack.c.l.b16 %v332
        %v828 = vunpack.c.h.b16 %v332
        %v829 = vunpack.c.l.b16 %v333
        %v830 = vunpack.c.h.b16 %v333
        %v831 = vunpack.c.l.b16 %v334
        %v832 = vunpack.c.h.b16 %v334
        %v833 = vunpack.c.l.b16 %v335
        %v834 = vunpack.c.h.b16 %v335
        %v835 = vunpack.c.l.b16 %v336
        %v836 = vunpack.c.h.b16 %v336
        %v837 = vunpack.c.l.b16 %v337
        %v838 = vunpack.c.h.b16 %v337
        %v839 = vunpack.c.l.b16 %v338
        %v840 = vunpack.c.h.b16 %v338
        %v841 = vunpack.c.l.b16 %v339
        %v842 = vunpack.c.h.b16 %v339
        %v843 = vunpack.c.l.b16 %v340
        %v844 = vunpack.c.h.b16 %v340
        %v845 = vunpack.c.l.b16 %v341
        %v846 = vunpack.c.h.b16 %v341
        %v847 = vunpack.c.l.b16 %v342
        %v848 = vunpack.c.h.b16 %v342
        %v849 = vunpack.c.l.b16 %v343
        %v850 = vunpack.c.h.b16 %v343
        %v851 = vunpack.c.l.b16 %v344
        %v852 = vunpack.c.h.b16 %v344
        %v853 = vunpack.c.l.b16 %v345
        %v854 = vunpack.c.h.b16 %v345
        %v855 = vunpack.c.l.b16 %v346
        %v856 = vunpack.c.h.b16 %v346
        %v857 = vunpack.c.l.b16 %v347
        %v858 = vunpack.c.h.b16 %v347
        %v859 = vunpack.c.l.b16 %v348
        %v860 = vunpack.c.h.b16 %v348
        %v861 = vunpack.c.l.b16 %v349
        %v862 = vunpack.c.h.b16 %v349
        %v863 = vunpack.c.l.b16 %v350
        %v864 = vunpack.c.h.b16 %v350
        %v865 = vunpack.c.l.b16 %v351
        %v866 = vunpack.c.h.b16 %v351
        %v867 = vunpack.c.l.b16 %v352
        %v868 = vunpack.c.h.b16 %v352
        %v869 = vunpack.c.l.b16 %v353
        %v870 = vunpack.c.h.b16 %v353
        %v871 = vunpack.c.l.b16 %v354
        %v872 = vunpack.c.h.b16 %v354
        %v873 = vunpack.c.l.b16 %v355
        %v874 = vunpack.c.h.b16 %v355
        %v875 = vunpack.c.l.b16 %v356
        %v876 = vunpack.c.h.b16 %v356
        %v877 = vunpack.c.l.b16 %v357
        %v878 = vunpack.c.h.b16 %v357
        %v879 = vunpack.c.l.b16 %v358
        %v880 = vunpack.c.h.b16 %v358
        %v881 = vunpack.c.l.b16 %v359
        %v882 = vunpack.c.h.b16 %v359
        %v883 = vunpack.c.l.b16 %v360
        %v884 = vunpack.c.h.b16 %v360
        %v885 = vunpack.c.l.b16 %v361
        %v886 = vunpack.c.h.b16 %v361
        %v887 = vunpack.c.l.b16 %v362
        %v888 = vunpack.c.h.b16 %v362
        %v889 = vunpack.c.l.b16 %v363
        %v890 = vunpack.c.h.b16 %v363
        %v891 = vunpack.c.l.b16 %v364
        %v892 = vunpack.c.h.b16 %v364
        %v893 = vunpack.c.l.b16 %v365
        %v894 = vunpack.c.h.b16 %v365
        %v895 = vunpack.c.l.b16 %v366
        %v896 = vunpack.c.h.b16 %v366
        %v897 = vunpack.c.l.b16 %v367
        %v898 = vunpack.c.h.b16 %v367
        %v899 = vunpack.c.l.b16 %v368
        %v900 = vunpack.c.h.b16 %v368
        %v901 = vunpack.c.l.b16 %v369
        %v902 = vunpack.c.h.b16 %v369
        %v903 = vunpack.c.l.b16 %v370
        %v904 = vunpack.c.h.b16 %v370
        %v905 = vunpack.c.l.b16 %v371
        %v906 = vunpack.c.h.b16 %v371
        %v907 = vunpack.c.l.b16 %v372
        %v908 = vunpack.c.h.b16 %v372
        %v909 = vunpack.c.l.b16 %v373
        %v910 = vunpack.c.h.b16 %v373
        %v911 = vunpack.c.l.b16 %v374
        %v912 = vunpack.c.h.b16 %v374
        %v913 = vunpack.c.l.b16 %v375
        %v914 = vunpack.c.h.b16 %v375
        %v915 = vunpack.c.l.b16 %v376
        %v916 = vunpack.c.h.b16 %v376
        %v917 = vunpack.c.l.b16 %v377
        %v918 = vunpack.c.h.b16 %v377
        %v919 = vunpack.c.l.b16 %v378
        %v920 = vunpack.c.h.b16 %v378
        %v921 = vunpack.c.l.b16 %v379
        %v922 = vunpack.c.h.b16 %v379
        %v923 = vunpack.c.l.b16 %v380
        %v924 = vunpack.c.h.b16 %v380
        %v925 = vunpack.c.l.b16 %v381
        %v926 = vunpack.c.h.b16 %v381
        %v927 = vunpack.c.l.b16 %v382
        %v928 = vunpack.c.h.b16 %v382
        %v929 = vunpack.c.l.b16 %v383
        %v930 = vunpack.c.h.b16 %v383
        %v931 = vunpack.c.l.b16 %v384
        %v932 = vunpack.c.h.b16 %v384
        %v933 = vunpack.c.l.b16 %v385
        %v934 = vunpack.c.h.b16 %v385
        %v935 = vunpack.c.l.b16 %v386
        %v936 = vunpack.c.h.b16 %v386
        %v937 = vunpack.c.l.b16 %v387
        %v938 = vunpack.c.h.b16 %v387
        %v939 = vunpack.c.l.b16 %v388
        %v940 = vunpack.c.h.b16 %v388
        %v941 = vunpack.c.l.b16 %v389
        %v942 = vunpack.c.h.b16 %v389
        %v943 = vunpack.c.l.b16 %v390
        %v944 = vunpack.c.h.b16 %v390
        %v945 = vunpack.c.l.b16 %v391
        %v946 = vunpack.c.h.b16 %v391
        %v947 = vunpack.c.l.b16 %v392
        %v948 = vunpack.c.h.b16 %v392
        %v949 = vunpack.c.l.b16 %v393
        %v950 = vunpack.c.h.b16 %v393
        %v951 = vunpack.c.l.b16 %v394
        %v952 = vunpack.c.h.b16 %v394
        %v953 = vunpack.c.l.b16 %v395
        %v954 = vunpack.c.h.b16 %v395
        %v955 = vunpack.c.l.b16 %v396
        %v956 = vunpack.c.h.b16 %v396
        %v957 = vunpack.c.l.b16 %v397
        %v958 = vunpack.c.h.b16 %v397
        %v959 = vunpack.c.l.b16 %v398
        %v960 = vunpack.c.h.b16 %v398
        %v961 = vunpack.c.l.b16 %v399
        %v962 = vunpack.c.h.b16 %v399
        %v963 = vunpack.c.l.b16 %v400
        %v964 = vunpack.c.h.b16 %v400
        %v965 = vunpack.c.l.b16 %v401
        %v966 = vunpack.c.h.b16 %v401
        %v967 = vunpack.c.l.b16 %v402
        %v968 = vunpack.c.h.b16 %v402
        %v969 = vunpack.c.l.b16 %v403
        %v970 = vunpack.c.h.b16 %v403
        %v971 = vunpack.c.l.b16 %v404
        %v972 = vunpack.c.h.b16 %v404
        %v973 = vunpack.c.l.b16 %v405
        %v974 = vunpack.c.h.b16 %v405
        %v975 = vunpack.c.l.b16 %v406
        %v976 = vunpack.c.h.b16 %v406
        %v977 = vunpack.c.l.b16 %v407
        %v978 = vunpack.c.h.b16 %v407
        %v979 = vunpack.c.l.b16 %v408
        %v980 = vunpack.c.h.b16 %v408
        %v981 = vunpack.c.l.b16 %v409
        %v982 = vunpack.c.h.b16 %v409
        %v983 = vunpack.c.l.b16 %v410
        %v984 = vunpack.c.h.b16 %v410
        %v985 = vunpack.c.l.b16 %v411
        %v986 = vunpack.c.h.b16 %v411
        %v987 = vunpack.c.l.b16 %v412
        %v988 = vunpack.c.h.b16 %v412
        %v989 = vunpack.c.l.b16 %v413
        %v990 = vunpack.c.h.b16 %v413
        %v991 = vunpack.c.l.b16 %v414
        %v992 = vunpack.c.h.b16 %v414
        %v993 = vunpack.c.l.b16 %v415
        %v994 = vunpack.c.h.b16 %v415
        %v995 = vunpack.c.l.b16 %v416
        %v996 = vunpack.c.h.b16 %v416
        %v997 = vunpack.c.l.b16 %v417
        %v998 = vunpack.c.h.b16 %v417
        %v999 = vunpack.c.l.b16 %v418
        %v1000 = vunpack.c.h.b16 %v418
        %v1001 = vunpack.c.l.b16 %v419
        %v1002 = vunpack.c.h.b16 %v419
        %v1003 = vunpack.c.l.b16 %v420
        %v1004 = vunpack.c.h.b16 %v420
        %v1005 = vunpack.c.l.b16 %v421
        %v1006 = vunpack.c.h.b16 %v421
        %v1007 = vunpack.c.l.b16 %v422
        %v1008 = vunpack.c.h.b16 %v422
        %v1009 = vunpack.c.l.b16 %v423
        %v1010 = vunpack.c.h.b16 %v423
        %v1011 = vunpack.c.l.b16 %v424
        %v1012 = vunpack.c.h.b16 %v424
        %v1013 = vunpack.c.l.b16 %v425
        %v1014 = vunpack.c.h.b16 %v425
        %v1015 = vunpack.c.l.b16 %v426
        %v1016 = vunpack.c.h.b16 %v426
        %v1017 = vunpack.c.l.b16 %v427
        %v1018 = vunpack.c.h.b16 %v427
        %v1019 = vunpack.c.l.b16 %v428
        %v1020 = vunpack.c.h.b16 %v428
        %v1021 = vunpack.c.l.b16 %v429
        %v1022 = vunpack.c.h.b16 %v429
        %v1023 = vunpack.c.l.b16 %v430
        %v1024 = vunpack.c.h.b16 %v430
        %v1025 = vunpack.c.l.b16 %v431
        %v1026 = vunpack.c.h.b16 %v431
        %v1027 = vunpack.c.l.b16 %v432
        %v1028 = vunpack.c.h.b16 %v432
        %v1029 = vunpack.c.l.b16 %v433
        %v1030 = vunpack.c.h.b16 %v433
        %v1031 = vunpack.c.l.b16 %v434
        %v1032 = vunpack.c.h.b16 %v434
        %v1033 = vunpack.c.l.b16 %v435
        %v1034 = vunpack.c.h.b16 %v435
        %v1035 = vunpack.c.l.b16 %v436
        %v1036 = vunpack.c.h.b16 %v436
        %v1037 = vunpack.c.l.b16 %v437
        %v1038 = vunpack.c.h.b16 %v437
        %v1039 = vunpack.c.l.b16 %v438
        %v1040 = vunpack.c.h.b16 %v438
        %v1041 = vunpack.c.l.b16 %v439
        %v1042 = vunpack.c.h.b16 %v439
        %v1043 = vunpack.c.l.b16 %v440
        %v1044 = vunpack.c.h.b16 %v440
        %v1045 = vunpack.c.l.b16 %v441
        %v1046 = vunpack.c.h.b16 %v441
        %v1047 = vunpack.c.l.b16 %v442
        %v1048 = vunpack.c.h.b16 %v442
        %v1049 = vunpack.c.l.b16 %v443
        %v1050 = vunpack.c.h.b16 %v443
        %v1051 = vunpack.c.l.b16 %v444
        %v1052 = vunpack.c.h.b16 %v444
        %v1053 = vunpack.c.l.b16 %v445
        %v1054 = vunpack.c.h.b16 %v445
        %v1055 = vunpack.c.l.b16 %v446
        %v1056 = vunpack.c.h.b16 %v446
        %v1057 = vunpack.c.l.b16 %v447
        %v1058 = vunpack.c.h.b16 %v447
        %v1059 = vunpack.c.l.b16 %v448
        %v1060 = vunpack.c.h.b16 %v448
        %v1061 = vunpack.c.l.b16 %v449
        %v1062 = vunpack.c.h.b16 %v449
        %v1063 = vunpack.c.l.b16 %v450
        %v1064 = vunpack.c.h.b16 %v450
        %v1065 = vunpack.c.l.b16 %v451
        %v1066 = vunpack.c.h.b16 %v451
        %v1067 = vunpack.c.l.b16 %v452
        %v1068 = vunpack.c.h.b16 %v452
        %v1069 = vunpack.c.l.b16 %v453
        %v1070 = vunpack.c.h.b16 %v453
        %v1071 = vunpack.c.l.b16 %v454
        %v1072 = vunpack.c.h.b16 %v454
        %v1073 = vunpack.c.l.b16 %v455
        %v1074 = vunpack.c.h.b16 %v455
        %v1075 = vunpack.c.l.b16 %v456
        %v1076 = vunpack.c.h.b16 %v456
        %v1077 = vunpack.c.l.b16 %v457
        %v1078 = vunpack.c.h.b16 %v457
        %v1079 = vunpack.c.l.b16 %v458
        %v1080 = vunpack.c.h.b16 %v458
        %v1081 = vunpack.c.l.b16 %v459
        %v1082 = vunpack.c.h.b16 %v459
        %v1083 = vunpack.c.l.b16 %v460
        %v1084 = vunpack.c.h.b16 %v460
        %v1085 = vunpack.c.l.b16 %v461
        %v1086 = vunpack.c.h.b16 %v461
        %v1087 = vunpack.c.l.b16 %v462
        %v1088 = vunpack.c.h.b16 %v462
        %v1089 = vunpack.c.l.b16 %v463
        %v1090 = vunpack.c.h.b16 %v463
        %v1091 = vunpack.c.l.b16 %v464
        %v1092 = vunpack.c.h.b16 %v464
        %v1093 = vpack.c.b16 %v713, %v709
        %v1094 = vpack.c.b16 %v714, %v710
        %v1095 = vpack.c.b16 %v715, %v711
        %v1096 = vpack.c.b16 %v716, %v712
        %v1097 = vpack.c.b16 %v721, %v717
        %v1098 = vpack.c.b16 %v722, %v718
        %v1099 = vpack.c.b16 %v723, %v719
        %v1100 = vpack.c.b16 %v724, %v720
        %v1101 = vpack.c.b16 %v729, %v725
        %v1102 = vpack.c.b16 %v730, %v726
        %v1103 = vpack.c.b16 %v731, %v727
        %v1104 = vpack.c.b16 %v732, %v728
        %v1105 = vpack.c.b16 %v737, %v733
        %v1106 = vpack.c.b16 %v738, %v734
        %v1107 = vpack.c.b16 %v739, %v735
        %v1108 = vpack.c.b16 %v740, %v736
        %v1109 = vpack.c.b16 %v745, %v741
        %v1110 = vpack.c.b16 %v746, %v742
        %v1111 = vpack.c.b16 %v747, %v743
        %v1112 = vpack.c.b16 %v748, %v744
        %v1113 = vpack.c.b16 %v753, %v749
        %v1114 = vpack.c.b16 %v754, %v750
        %v1115 = vpack.c.b16 %v755, %v751
        %v1116 = vpack.c.b16 %v756, %v752
        %v1117 = vpack.c.b16 %v761, %v757
        %v1118 = vpack.c.b16 %v762, %v758
        %v1119 = vpack.c.b16 %v763, %v759
        %v1120 = vpack.c.b16 %v764, %v760
        %v1121 = vpack.c.b16 %v769, %v765
        %v1122 = vpack.c.b16 %v770, %v766
        %v1123 = vpack.c.b16 %v771, %v767
        %v1124 = vpack.c.b16 %v772, %v768
        %v1125 = vpack.c.b16 %v777, %v773
        %v1126 = vpack.c.b16 %v778, %v774
        %v1127 = vpack.c.b16 %v779, %v775
        %v1128 = vpack.c.b16 %v780, %v776
        %v1129 = vpack.c.b16 %v785, %v781
        %v1130 = vpack.c.b16 %v786, %v782
        %v1131 = vpack.c.b16 %v787, %v783
        %v1132 = vpack.c.b16 %v788, %v784
        %v1133 = vpack.c.b16 %v793, %v789
        %v1134 = vpack.c.b16 %v794, %v790
        %v1135 = vpack.c.b16 %v795, %v791
        %v1136 = vpack.c.b16 %v796, %v792
        %v1137 = vpack.c.b16 %v801, %v797
        %v1138 = vpack.c.b16 %v802, %v798
        %v1139 = vpack.c.b16 %v803, %v799
        %v1140 = vpack.c.b16 %v804, %v800
        %v1141 = vpack.c.b16 %v809, %v805
        %v1142 = vpack.c.b16 %v810, %v806
        %v1143 = vpack.c.b16 %v811, %v807
        %v1144 = vpack.c.b16 %v812, %v808
        %v1145 = vpack.c.b16 %v817, %v813
        %v1146 = vpack.c.b16 %v818, %v814
        %v1147 = vpack.c.b16 %v819, %v815
        %v1148 = vpack.c.b16 %v820, %v816
        %v1149 = vpack.c.b16 %v825, %v821
        %v1150 = vpack.c.b16 %v826, %v822
        %v1151 = vpack.c.b16 %v827, %v823
        %v1152 = vpack.c.b16 %v828, %v824
        %v1153 = vpack.c.b16 %v833, %v829
        %v1154 = vpack.c.b16 %v834, %v830
        %v1155 = vpack.c.b16 %v835, %v831
        %v1156 = vpack.c.b16 %v836, %v832
        %v1157 = vpack.c.b16 %v841, %v837
        %v1158 = vpack.c.b16 %v842, %v838
        %v1159 = vpack.c.b16 %v843, %v839
        %v1160 = vpack.c.b16 %v844, %v840
        %v1161 = vpack.c.b16 %v849, %v845
        %v1162 = vpack.c.b16 %v850, %v846
        %v1163 = vpack.c.b16 %v851, %v847
        %v1164 = vpack.c.b16 %v852, %v848
        %v1165 = vpack.c.b16 %v857, %v853
        %v1166 = vpack.c.b16 %v858, %v854
        %v1167 = vpack.c.b16 %v859, %v855
        %v1168 = vpack.c.b16 %v860, %v856
        %v1169 = vpack.c.b16 %v865, %v861
        %v1170 = vpack.c.b16 %v866, %v862
        %v1171 = vpack.c.b16 %v867, %v863
        %v1172 = vpack.c.b16 %v868, %v864
        %v1173 = vpack.c.b16 %v873, %v869
        %v1174 = vpack.c.b16 %v874, %v870
        %v1175 = vpack.c.b16 %v875, %v871
        %v1176 = vpack.c.b16 %v876, %v872
        %v1177 = vpack.c.b16 %v881, %v877
        %v1178 = vpack.c.b16 %v882, %v878
        %v1179 = vpack.c.b16 %v883, %v879
        %v1180 = vpack.c.b16 %v884, %v880
        %v1181 = vpack.c.b16 %v889, %v885
        %v1182 = vpack.c.b16 %v890, %v886
        %v1183 = vpack.c.b16 %v891, %v887
        %v1184 = vpack.c.b16 %v892, %v888
        %v1185 = vpack.c.b16 %v897, %v893
        %v1186 = vpack.c.b16 %v898, %v894
        %v1187 = vpack.c.b16 %v899, %v895
        %v1188 = vpack.c.b16 %v900, %v896
        %v1189 = vpack.c.b16 %v905, %v901
        %v1190 = vpack.c.b16 %v906, %v902
        %v1191 = vpack.c.b16 %v907, %v903
        %v1192 = vpack.c.b16 %v908, %v904
        %v1193 = vpack.c.b16 %v913, %v909
        %v1194 = vpack.c.b16 %v914, %v910
        %v1195 = vpack.c.b16 %v915, %v911
        %v1196 = vpack.c.b16 %v916, %v912
        %v1197 = vpack.c.b16 %v921, %v917
        %v1198 = vpack.c.b16 %v922, %v918
        %v1199 = vpack.c.b16 %v923, %v919
        %v1200 = vpack.c.b16 %v924, %v920
        %v1201 = vpack.c.b16 %v929, %v925
        %v1202 = vpack.c.b16 %v930, %v926
        %v1203 = vpack.c.b16 %v931, %v927
        %v1204 = vpack.c.b16 %v932, %v928
        %v1205 = vpack.c.b16 %v937, %v933
        %v1206 = vpack.c.b16 %v938, %v934
        %v1207 = vpack.c.b16 %v939, %v935
        %v1208 = vpack.c.b16 %v940, %v936
        %v1209 = vpack.c.b16 %v945, %v941
        %v1210 = vpack.c.b16 %v946, %v942
        %v1211 = vpack.c.b16 %v947, %v943
        %v1212 = vpack.c.b16 %v948, %v944
        %v1213 = vpack.c.b16 %v953, %v949
        %v1214 = vpack.c.b16 %v954, %v950
        %v1215 = vpack.c.b16 %v955, %v951
        %v1216 = vpack.c.b16 %v956, %v952
        %v1217 = vpack.c.b16 %v961, %v957
        %v1218 = vpack.c.b16 %v962, %v958
        %v1219 = vpack.c.b16 %v963, %v959
        %v1220 = vpack.c.b16 %v964, %v960
        %v1221 = vpack.c.b16 %v969, %v965
        %v1222 = vpack.c.b16 %v970, %v966
        %v1223 = vpack.c.b16 %v971, %v967
        %v1224 = vpack.c.b16 %v972, %v968
        %v1225 = vpack.c.b16 %v977, %v973
        %v1226 = vpack.c.b16 %v978, %v974
        %v1227 = vpack.c.b16 %v979, %v975
        %v1228 = vpack.c.b16 %v980, %v976
        %v1229 = vpack.c.b16 %v985, %v981
        %v1230 = vpack.c.b16 %v986, %v982
        %v1231 = vpack.c.b16 %v987, %v983
        %v1232 = vpack.c.b16 %v988, %v984
        %v1233 = vpack.c.b16 %v993, %v989
        %v1234 = vpack.c.b16 %v994, %v990
        %v1235 = vpack.c.b16 %v995, %v991
        %v1236 = vpack.c.b16 %v996, %v992
        %v1237 = vpack.c.b16 %v1001, %v997
        %v1238 = vpack.c.b16 %v1002, %v998
        %v1239 = vpack.c.b16 %v1003, %v999
        %v1240 = vpack.c.b16 %v1004, %v1000
        %v1241 = vpack.c.b16 %v1009, %v1005
        %v1242 = vpack.c.b16 %v1010, %v1006
        %v1243 = vpack.c.b16 %v1011, %v1007
        %v1244 = vpack.c.b16 %v1012, %v1008
        %v1245 = vpack.c.b16 %v1017, %v1013
        %v1246 = vpack.c.b16 %v1018, %v1014
        %v1247 = vpack.c.b16 %v1019, %v1015
        %v1248 = vpack.c.b16 %v1020, %v1016
        %v1249 = vpack.c.b16 %v1025, %v1021
        %v1250 = vpack.c.b16 %v1026, %v1022
        %v1251 = vpack.c.b16 %v1027, %v1023
        %v1252 = vpack.c.b16 %v1028, %v1024
        %v1253 = vpack.c.b16 %v1033, %v1029
        %v1254 = vpack.c.b16 %v1034, %v1030
        %v1255 = vpack.c.b16 %v1035, %v1031
        %v1256 = vpack.c.b16 %v1036, %v1032
        %v1257 = vpack.c.b16 %v1041, %v1037
        %v1258 = vpack.c.b16 %v1042, %v1038
        %v1259 = vpack.c.b16 %v1043, %v1039
        %v1260 = vpack.c.b16 %v1044, %v1040
        %v1261 = vpack.c.b16 %v1049, %v1045
        %v1262 = vpack.c.b16 %v1050, %v1046
        %v1263 = vpack.c.b16 %v1051, %v1047
        %v1264 = vpack.c.b16 %v1052, %v1048
        %v1265 = vpack.c.b16 %v1057, %v1053
        %v1266 = vpack.c.b16 %v1058, %v1054
        %v1267 = vpack.c.b16 %v1059, %v1055
        %v1268 = vpack.c.b16 %v1060, %v1056
        %v1269 = vpack.c.b16 %v1065, %v1061
        %v1270 = vpack.c.b16 %v1066, %v1062
        %v1271 = vpack.c.b16 %v1067, %v1063
        %v1272 = vpack.c.b16 %v1068, %v1064
        %v1273 = vpack.c.b16 %v1073, %v1069
        %v1274 = vpack.c.b16 %v1074, %v1070
        %v1275 = vpack.c.b16 %v1075, %v1071
        %v1276 = vpack.c.b16 %v1076, %v1072
        %v1277 = vpack.c.b16 %v1081, %v1077
        %v1278 = vpack.c.b16 %v1082, %v1078
        %v1279 = vpack.c.b16 %v1083, %v1079
        %v1280 = vpack.c.b16 %v1084, %v1080
        %v1281 = vpack.c.b16 %v1089, %v1085
        %v1282 = vpack.c.b16 %v1090, %v1086
        %v1283 = vpack.c.b16 %v1091, %v1087
        %v1284 = vpack.c.b16 %v1092, %v1088
        %1477 = vmatprep.subr.bf16.mxu0 %v1094
        %1478 = vmatpush1.bf16.msra.mxu0 %v1093
        %1479 = vmatprep.subr.bf16.mxu0 %v1098
        %1480 = vmatpush1.bf16.msra.mxu0 %v1097
        %1481 = vmatprep.subr.bf16.mxu0 %v1102
        %1482 = vmatpush1.bf16.msra.mxu0 %v1101
        %1483 = vmatprep.subr.bf16.mxu0 %v1106
        %1484 = vmatpush1.bf16.msra.mxu0 %v1105
        %1485 = vmatprep.subr.bf16.mxu0 %v1110
        %1486 = vmatpush1.bf16.msra.mxu0 %v1109
        %1487 = vmatprep.subr.bf16.mxu0 %v1114
        %1488 = vmatpush1.bf16.msra.mxu0 %v1113
        %1489 = vmatprep.subr.bf16.mxu0 %v1118
        %1490 = vmatpush1.bf16.msra.mxu0 %v1117
        %1491 = vmatprep.subr.bf16.mxu0 %v1122
        %1492 = vmatpush1.bf16.msra.mxu0 %v1121
        %1493 = vmatprep.subr.bf16.mxu0 %v1126
        %1494 = vmatpush1.bf16.msra.mxu0 %v1125
        %1495 = vmatprep.subr.bf16.mxu0 %v1130
        %1496 = vmatpush1.bf16.msra.mxu0 %v1129
        %1497 = vmatprep.subr.bf16.mxu0 %v1134
        %1498 = vmatpush1.bf16.msra.mxu0 %v1133
        %1499 = vmatprep.subr.bf16.mxu0 %v1138
        %1500 = vmatpush1.bf16.msra.mxu0 %v1137
        %1501 = vmatprep.subr.bf16.mxu0 %v1142
        %1502 = vmatpush1.bf16.msra.mxu0 %v1141
        %1503 = vmatprep.subr.bf16.mxu0 %v1146
        %1504 = vmatpush1.bf16.msra.mxu0 %v1145
        %1505 = vmatprep.subr.bf16.mxu0 %v1150
        %1506 = vmatpush1.bf16.msra.mxu0 %v1149
        %1507 = vmatprep.subr.bf16.mxu0 %v1154
        %1508 = vmatpush1.bf16.msra.mxu0 %v1153
        %1509 = vmatprep.mubr.bf16.mxu0 %v506
        %1510 = vmatmul.mubr.bf16.gmra.mrb[0].mxu0 %v505
        %v1511 = vpop.f32.mrb[0].mxu0
        %v1512 = vadd.f32 %v470, %v1511
        %v1513 = vpop.f32.mrb[0].mxu0
        %v1514 = vadd.f32 %v474, %v1513
        %v1515 = vpop.f32.mrb[0].mxu0
        %v1516 = vadd.f32 %v470, %v1515
        %v1517 = vpop.f32.mrb[0].mxu0
        %v1518 = vadd.f32 %v474, %v1517
        %1519 = vdwg.mxu0
        %1520 = vmatprep.subr.bf16.mxu0 %v1158
        %1521 = vmatpush1.bf16.msra.mxu0 %v1157
        %1522 = vmatprep.subr.bf16.mxu0 %v1162
        %1523 = vmatpush1.bf16.msra.mxu0 %v1161
        %1524 = vmatprep.subr.bf16.mxu0 %v1166
        %1525 = vmatpush1.bf16.msra.mxu0 %v1165
        %1526 = vmatprep.subr.bf16.mxu0 %v1170
        %1527 = vmatpush1.bf16.msra.mxu0 %v1169
        %1528 = vmatprep.subr.bf16.mxu0 %v1174
        %1529 = vmatpush1.bf16.msra.mxu0 %v1173
        %1530 = vmatprep.subr.bf16.mxu0 %v1178
        %1531 = vmatpush1.bf16.msra.mxu0 %v1177
        %1532 = vmatprep.subr.bf16.mxu0 %v1182
        %1533 = vmatpush1.bf16.msra.mxu0 %v1181
        %1534 = vmatprep.subr.bf16.mxu0 %v1186
        %1535 = vmatpush1.bf16.msra.mxu0 %v1185
        %1536 = vmatprep.subr.bf16.mxu0 %v1190
        %1537 = vmatpush1.bf16.msra.mxu0 %v1189
        %1538 = vmatprep.subr.bf16.mxu0 %v1194
        %1539 = vmatpush1.bf16.msra.mxu0 %v1193
        %1540 = vmatprep.subr.bf16.mxu0 %v1198
        %1541 = vmatpush1.bf16.msra.mxu0 %v1197
        %1542 = vmatprep.subr.bf16.mxu0 %v1202
        %1543 = vmatpush1.bf16.msra.mxu0 %v1201
        %1544 = vmatprep.subr.bf16.mxu0 %v1206
        %1545 = vmatpush1.bf16.msra.mxu0 %v1205
        %1546 = vmatprep.subr.bf16.mxu0 %v1210
        %1547 = vmatpush1.bf16.msra.mxu0 %v1209
        %1548 = vmatprep.subr.bf16.mxu0 %v1214
        %1549 = vmatpush1.bf16.msra.mxu0 %v1213
        %1550 = vmatprep.subr.bf16.mxu0 %v1218
        %1551 = vmatpush1.bf16.msra.mxu0 %v1217
        %1552 = vmatprep.mubr.bf16.mxu0 %v508
        %1553 = vmatmul.mubr.bf16.gmra.mrb[0].mxu0 %v507
        %v1554 = vpop.f32.mrb[0].mxu0
        %v1555 = vadd.f32 %v1512, %v1554
        %v1556 = vpop.f32.mrb[0].mxu0
        %v1557 = vadd.f32 %v1514, %v1556
        %v1558 = vpop.f32.mrb[0].mxu0
        %v1559 = vadd.f32 %v1516, %v1558
        %v1560 = vpop.f32.mrb[0].mxu0
        %v1561 = vadd.f32 %v1518, %v1560
        %1562 = vdwg.mxu0
        %1563 = vmatprep.subr.bf16.mxu0 %v1222
        %1564 = vmatpush1.bf16.msra.mxu0 %v1221
        %1565 = vmatprep.subr.bf16.mxu0 %v1226
        %1566 = vmatpush1.bf16.msra.mxu0 %v1225
        %1567 = vmatprep.subr.bf16.mxu0 %v1230
        %1568 = vmatpush1.bf16.msra.mxu0 %v1229
        %1569 = vmatprep.subr.bf16.mxu0 %v1234
        %1570 = vmatpush1.bf16.msra.mxu0 %v1233
        %1571 = vmatprep.subr.bf16.mxu0 %v1238
        %1572 = vmatpush1.bf16.msra.mxu0 %v1237
        %1573 = vmatprep.subr.bf16.mxu0 %v1242
        %1574 = vmatpush1.bf16.msra.mxu0 %v1241
        %1575 = vmatprep.subr.bf16.mxu0 %v1246
        %1576 = vmatpush1.bf16.msra.mxu0 %v1245
        %1577 = vmatprep.subr.bf16.mxu0 %v1250
        %1578 = vmatpush1.bf16.msra.mxu0 %v1249
        %1579 = vmatprep.subr.bf16.mxu0 %v1254
        %1580 = vmatpush1.bf16.msra.mxu0 %v1253
        %1581 = vmatprep.subr.bf16.mxu0 %v1258
        %1582 = vmatpush1.bf16.msra.mxu0 %v1257
        %1583 = vmatprep.subr.bf16.mxu0 %v1262
        %1584 = vmatpush1.bf16.msra.mxu0 %v1261
        %1585 = vmatprep.subr.bf16.mxu0 %v1266
        %1586 = vmatpush1.bf16.msra.mxu0 %v1265
        %1587 = vmatprep.subr.bf16.mxu0 %v1270
        %1588 = vmatpush1.bf16.msra.mxu0 %v1269
        %1589 = vmatprep.subr.bf16.mxu0 %v1274
        %1590 = vmatpush1.bf16.msra.mxu0 %v1273
        %1591 = vmatprep.subr.bf16.mxu0 %v1278
        %1592 = vmatpush1.bf16.msra.mxu0 %v1277
        %1593 = vmatprep.subr.bf16.mxu0 %v1282
        %1594 = vmatpush1.bf16.msra.mxu0 %v1281
        %1595 = vmatprep.mubr.bf16.mxu0 %v510
        %1596 = vmatmul.mubr.bf16.gmra.mrb[0].mxu0 %v509
        %v1597 = vpop.f32.mrb[0].mxu0
        %v1598 = vadd.f32 %v1555, %v1597
        %v1599 = vpop.f32.mrb[0].mxu0
        %v1600 = vadd.f32 %v1557, %v1599
        %v1601 = vpop.f32.mrb[0].mxu0
        %v1602 = vadd.f32 %v1559, %v1601
        %v1603 = vpop.f32.mrb[0].mxu0
        %v1604 = vadd.f32 %v1561, %v1603
        %1605 = vdwg.mxu0
        %1606 = vmatprep.subr.bf16.mxu0 %v1096
        %1607 = vmatpush1.bf16.msra.mxu0 %v1095
        %1608 = vmatprep.subr.bf16.mxu0 %v1100
        %1609 = vmatpush1.bf16.msra.mxu0 %v1099
        %1610 = vmatprep.subr.bf16.mxu0 %v1104
        %1611 = vmatpush1.bf16.msra.mxu0 %v1103
        %1612 = vmatprep.subr.bf16.mxu0 %v1108
        %1613 = vmatpush1.bf16.msra.mxu0 %v1107
        %1614 = vmatprep.subr.bf16.mxu0 %v1112
        %1615 = vmatpush1.bf16.msra.mxu0 %v1111
        %1616 = vmatprep.subr.bf16.mxu0 %v1116
        %1617 = vmatpush1.bf16.msra.mxu0 %v1115
        %1618 = vmatprep.subr.bf16.mxu0 %v1120
        %1619 = vmatpush1.bf16.msra.mxu0 %v1119
        %1620 = vmatprep.subr.bf16.mxu0 %v1124
        %1621 = vmatpush1.bf16.msra.mxu0 %v1123
        %1622 = vmatprep.subr.bf16.mxu0 %v1128
        %1623 = vmatpush1.bf16.msra.mxu0 %v1127
        %1624 = vmatprep.subr.bf16.mxu0 %v1132
        %1625 = vmatpush1.bf16.msra.mxu0 %v1131
        %1626 = vmatprep.subr.bf16.mxu0 %v1136
        %1627 = vmatpush1.bf16.msra.mxu0 %v1135
        %1628 = vmatprep.subr.bf16.mxu0 %v1140
        %1629 = vmatpush1.bf16.msra.mxu0 %v1139
        %1630 = vmatprep.subr.bf16.mxu0 %v1144
        %1631 = vmatpush1.bf16.msra.mxu0 %v1143
        %1632 = vmatprep.subr.bf16.mxu0 %v1148
        %1633 = vmatpush1.bf16.msra.mxu0 %v1147
        %1634 = vmatprep.subr.bf16.mxu0 %v1152
        %1635 = vmatpush1.bf16.msra.mxu0 %v1151
        %1636 = vmatprep.subr.bf16.mxu0 %v1156
        %1637 = vmatpush1.bf16.msra.mxu0 %v1155
        %1638 = vmatprep.mubr.bf16.mxu0 %v506
        %1639 = vmatmul.mubr.bf16.gmra.mrb[0].mxu0 %v505
        %v1640 = vpop.f32.mrb[0].mxu0
        %v1641 = vadd.f32 %v478, %v1640
        %v1642 = vpop.f32.mrb[0].mxu0
        %v1643 = vadd.f32 %v482, %v1642
        %v1644 = vpop.f32.mrb[0].mxu0
        %v1645 = vadd.f32 %v478, %v1644
        %v1646 = vpop.f32.mrb[0].mxu0
        %v1647 = vadd.f32 %v482, %v1646
        %1648 = vdwg.mxu0
        %1649 = vmatprep.subr.bf16.mxu0 %v1160
        %1650 = vmatpush1.bf16.msra.mxu0 %v1159
        %1651 = vmatprep.subr.bf16.mxu0 %v1164
        %1652 = vmatpush1.bf16.msra.mxu0 %v1163
        %1653 = vmatprep.subr.bf16.mxu0 %v1168
        %1654 = vmatpush1.bf16.msra.mxu0 %v1167
        %1655 = vmatprep.subr.bf16.mxu0 %v1172
        %1656 = vmatpush1.bf16.msra.mxu0 %v1171
        %1657 = vmatprep.subr.bf16.mxu0 %v1176
        %1658 = vmatpush1.bf16.msra.mxu0 %v1175
        %1659 = vmatprep.subr.bf16.mxu0 %v1180
        %1660 = vmatpush1.bf16.msra.mxu0 %v1179
        %1661 = vmatprep.subr.bf16.mxu0 %v1184
        %1662 = vmatpush1.bf16.msra.mxu0 %v1183
        %1663 = vmatprep.subr.bf16.mxu0 %v1188
        %1664 = vmatpush1.bf16.msra.mxu0 %v1187
        %1665 = vmatprep.subr.bf16.mxu0 %v1192
        %1666 = vmatpush1.bf16.msra.mxu0 %v1191
        %1667 = vmatprep.subr.bf16.mxu0 %v1196
        %1668 = vmatpush1.bf16.msra.mxu0 %v1195
        %1669 = vmatprep.subr.bf16.mxu0 %v1200
        %1670 = vmatpush1.bf16.msra.mxu0 %v1199
        %1671 = vmatprep.subr.bf16.mxu0 %v1204
        %1672 = vmatpush1.bf16.msra.mxu0 %v1203
        %1673 = vmatprep.subr.bf16.mxu0 %v1208
        %1674 = vmatpush1.bf16.msra.mxu0 %v1207
        %1675 = vmatprep.subr.bf16.mxu0 %v1212
        %1676 = vmatpush1.bf16.msra.mxu0 %v1211
        %1677 = vmatprep.subr.bf16.mxu0 %v1216
        %1678 = vmatpush1.bf16.msra.mxu0 %v1215
        %1679 = vmatprep.subr.bf16.mxu0 %v1220
        %1680 = vmatpush1.bf16.msra.mxu0 %v1219
        %1681 = vmatprep.mubr.bf16.mxu0 %v508
        %1682 = vmatmul.mubr.bf16.gmra.mrb[0].mxu0 %v507
        %v1683 = vpop.f32.mrb[0].mxu0
        %v1684 = vadd.f32 %v1641, %v1683
        %v1685 = vpop.f32.mrb[0].mxu0
        %v1686 = vadd.f32 %v1643, %v1685
        %v1687 = vpop.f32.mrb[0].mxu0
        %v1688 = vadd.f32 %v1645, %v1687
        %v1689 = vpop.f32.mrb[0].mxu0
        %v1690 = vadd.f32 %v1647, %v1689
        %1691 = vdwg.mxu0
        %1692 = vmatprep.subr.bf16.mxu0 %v1224
        %1693 = vmatpush1.bf16.msra.mxu0 %v1223
        %1694 = vmatprep.subr.bf16.mxu0 %v1228
        %1695 = vmatpush1.bf16.msra.mxu0 %v1227
        %1696 = vmatprep.subr.bf16.mxu0 %v1232
        %1697 = vmatpush1.bf16.msra.mxu0 %v1231
        %1698 = vmatprep.subr.bf16.mxu0 %v1236
        %1699 = vmatpush1.bf16.msra.mxu0 %v1235
        %1700 = vmatprep.subr.bf16.mxu0 %v1240
        %1701 = vmatpush1.bf16.msra.mxu0 %v1239
        %1702 = vmatprep.subr.bf16.mxu0 %v1244
        %1703 = vmatpush1.bf16.msra.mxu0 %v1243
        %1704 = vmatprep.subr.bf16.mxu0 %v1248
        %1705 = vmatpush1.bf16.msra.mxu0 %v1247
        %1706 = vmatprep.subr.bf16.mxu0 %v1252
        %1707 = vmatpush1.bf16.msra.mxu0 %v1251
        %1708 = vmatprep.subr.bf16.mxu0 %v1256
        %1709 = vmatpush1.bf16.msra.mxu0 %v1255
        %1710 = vmatprep.subr.bf16.mxu0 %v1260
        %1711 = vmatpush1.bf16.msra.mxu0 %v1259
        %1712 = vmatprep.subr.bf16.mxu0 %v1264
        %1713 = vmatpush1.bf16.msra.mxu0 %v1263
        %1714 = vmatprep.subr.bf16.mxu0 %v1268
        %1715 = vmatpush1.bf16.msra.mxu0 %v1267
        %1716 = vmatprep.subr.bf16.mxu0 %v1272
        %1717 = vmatpush1.bf16.msra.mxu0 %v1271
        %1718 = vmatprep.subr.bf16.mxu0 %v1276
        %1719 = vmatpush1.bf16.msra.mxu0 %v1275
        %1720 = vmatprep.subr.bf16.mxu0 %v1280
        %1721 = vmatpush1.bf16.msra.mxu0 %v1279
        %1722 = vmatprep.subr.bf16.mxu0 %v1284
        %1723 = vmatpush1.bf16.msra.mxu0 %v1283
        %1724 = vmatprep.mubr.bf16.mxu0 %v510
        %1725 = vmatmul.mubr.bf16.gmra.mrb[0].mxu0 %v509
        %v1726 = vpop.f32.mrb[0].mxu0
        %v1727 = vadd.f32 %v1684, %v1726
        %v1728 = vpop.f32.mrb[0].mxu0
        %v1729 = vadd.f32 %v1686, %v1728
        %v1730 = vpop.f32.mrb[0].mxu0
        %v1731 = vadd.f32 %v1688, %v1730
        %v1732 = vpop.f32.mrb[0].mxu0
        %v1733 = vadd.f32 %v1690, %v1732
        %1734 = vdwg.mxu0
        %v1735 = vpack.c.bf16 %v1602, %v1598
        %v1736 = vpack.c.bf16 %v1604, %v1600
        %v1737 = vpack.c.bf16 %v1731, %v1727
        %v1738 = vpack.c.bf16 %v1733, %v1729
        %v1743 = vunpack.c.l.b16 %v1735
        %v1744 = vunpack.c.l.b16 %v1736
        %v1745 = vunpack.c.l.b16 %v1737
        %v1746 = vunpack.c.l.b16 %v1738
        %v1747 = vunpack.c.h.b16 %v1735
        %v1748 = vunpack.c.h.b16 %v1736
        %v1749 = vunpack.c.h.b16 %v1737
        %v1750 = vunpack.c.h.b16 %v1738
        %v1751 = vpack.c.b16 %v1744, %v1743
        %v1752 = vpack.c.b16 %v1746, %v1745
        %v1753 = vpack.c.b16 %v1748, %v1747
        %v1754 = vpack.c.b16 %v1750, %v1749
        %1759 = vst [vmem:[%s261] sm:$0xff] %v1751
        %1760 = vst [vmem:[%s261 + $0x8] sm:$0xff] %v1752
        %1761 = vst [vmem:[%s261 + $0x10] sm:$0xff] %v1753
        %1762 = vst [vmem:[%s261 + $0x18] sm:$0xff] %v1754
        %s1763 = sand.u32 %s121, 1
        %s1764 = scalar_lea.sflag [#allocation4], %s1763
        %s1765 = sand.u32 %s121, 1
        %s1766 = smul.addr %s1765, 32
        %s1767 = scalar_lea.vmem [#allocation8], %s1766
        // Predicated region
        $region45: #{projection_forward.1} parent=31 // pred_check
          %p1768 = pneg %p131
        $region46: #{projection_forward.1} parent=31 // pred_check_branch
          %1770 = sbr.rel (%p1768) target = $region48
        $region47: #{projection_forward.1} parent=31 // pred_region
          %s1771 = smul.u32 2, %s25
          %s1772 = smul.u32 4, %s26
          %s1774 = ssub.s32 512, 512
          %1775 = vsyncadd %s1764, %s1774
          %s1776 = smul.addr %s1771, 8
          %s1777 = sadd.s32 %s1772, %s1776
          %s1778 = smul.addr %s1777, 64
          %s1779 = scalar_lea.hbm %s3, %s1778
          %s1780 = sshll.u32 %s1767, 4
          %s1781 = int_to_ptr.vmem [resolvable:$true] %s1780
          %1786 = dma.vmem_to_hbm [thread:$0]  %s1781, 512, %s1779, %s1764, 256, 512, 16
        $region48: #{projection_forward.1} parent=31 // pred_fallthru
          _
      $region32: #{projection_forward.1} parent=5 // pred_fallthru
        _
      %p1787 = scmp.le.s32.totalorder 2, %s16
      // Predicated region
      $region49: #{projection_forward.1} parent=5 // pred_check
        %p1788 = pneg %p1787
      $region50: #{projection_forward.1} parent=5 // pred_check_branch
        %1790 = sbr.rel (%p1788) target = $region52
      $region51: #{projection_forward.1} parent=5 // pred_region
        %s1791 = ssub.s32 %s16, 2
        // Predicated region
        $region53: #{projection_forward.1} parent=51 // pred_check
          %p1792 = pneg %p137
        $region54: #{projection_forward.1} parent=51 // pred_check_branch
          %1794 = sbr.rel (%p1792) target = $region56
        $region55: #{projection_forward.1} parent=51 // pred_region
          %s1795 = sand.u32 %s122, 1
          %s1796 = scalar_lea.sflag [#allocation4], %s1795
          %s1797 = sand.u32 %s122, 1
          %s1798 = smul.addr %s1797, 32
          %s1799 = scalar_lea.vmem [#allocation8], %s1798
          %1800 = dma.done %s1796, 512
        $region56: #{projection_forward.1} parent=51 // pred_fallthru
          _
      $region52: #{projection_forward.1} parent=5 // pred_fallthru
        _
    $region6: #{projection_forward.1} parent=1 // loop_footer
      %s20 = sadd.s32 1, %s16
    $region7: #{projection_forward.1} parent=1 // loop_footer_branch
      %15 = sbr.rel target = $region3
    $region8: #{projection_forward.1} parent=1 // loop_exit
      _
    %1801 = vsyncpa [#allocation3], 1
    %s1802 = scalar_lea.sflag [#allocation3], 1
    %1803 = vsyncpa %s1802, 1
    %1804 = vsyncpa [#allocation6], 1
    %s1805 = scalar_lea.sflag [#allocation6], 1
    %1806 = vsyncpa %s1805, 1
    %1807 = vsyncpa [#allocation4], 1
    %s1808 = scalar_lea.sflag [#allocation4], 1
    %1809 = vsyncpa %s1808, 1

</llo_original>
